<compile_context>
chip_gen: v6e
topology: v6e:2x2x1
jax: 0.10.0
libtpu: 0.0.40
codegen_flags: <defaults>
</compile_context>

<pallas_src>
import functools

import jax
import jax.numpy as jnp
from jax import lax
from jax.experimental import pallas as pl
from jax.experimental.pallas import tpu as pltpu


def _round_up(n, m):
    return ((n + m - 1) // m) * m


def _deepcluster_kernel(x_ref, w_ref, proto_ref, z_ref, logits_ref):
    """Fused projection + L2-normalize + prototype heads for one batch tile.

    x_ref:      (TB, Ep)  input embeddings tile (backbone output)
    w_ref:      (Lp, Ep)  pre-normalized weight-norm matrix W = g*v/||v||
    proto_ref:  (Kp, Lp)  all prototype head weights concatenated along dim 0
    z_ref:      (TB, Lp)  output: L2-normalized projection
    logits_ref: (TB, Kp)  output: concatenated prototype logits
    """
    x = x_ref[...].astype(jnp.float32)           # (TB, Ep)
    w = w_ref[...].astype(jnp.float32)           # (Lp, Ep)

    # z = x @ W^T, contracting the last dim of both operands (no transpose
    # materialized — MXU consumes W in its natural layout).
    z = lax.dot_general(x, w, (((1,), (1,)), ((), ())),
                        preferred_element_type=jnp.float32)       # (TB, Lp)

    # F.normalize(z, dim=-1, p=2): z / max(||z||, 1e-12)
    #   == z * rsqrt(max(sum(z^2), 1e-24))
    sumsq = jnp.sum(z * z, axis=-1, keepdims=True)                # (TB, 1)
    inv_norm = lax.rsqrt(jnp.maximum(sumsq, 1e-24))               # (TB, 1)
    z_n = z * inv_norm                                            # (TB, Lp)

    # logits = z_n @ P_all^T, again contracting last dims.
    p = proto_ref[...].astype(jnp.float32)                        # (Kp, Lp)
    logits = lax.dot_general(z_n, p, (((1,), (1,)), ((), ())),
                             preferred_element_type=jnp.float32)  # (TB, Kp)

    z_ref[...] = z_n.astype(z_ref.dtype)
    logits_ref[...] = logits.astype(logits_ref.dtype)


@functools.partial(jax.jit, static_argnames=("proto_sizes", "block_b"))
def deepcluster_head_forward(x, weight_v, weight_g, proto_concat, proto_sizes,
                             block_b=256):
    """Runs the fused Pallas kernel and splits prototype logits.

    x:            (B, E) backbone features
    weight_v:     (L, E) weight_norm `v`
    weight_g:     (L, 1) weight_norm `g`
    proto_concat: (K_total, L) concatenated prototype weights
    proto_sizes:  tuple of ints, number of prototypes per head
    block_b:      max batch-tile rows (sweep 256..1024 for large B; halve for
                  v7x's smaller VMEM if tiles get big)
    """
    B, E = x.shape
    L = weight_v.shape[0]
    K = proto_concat.shape[0]

    # --- hoisted weight norm: W = g * v / ||v|| (per-weight quantity) ---
    scale = weight_g * lax.rsqrt(
        jnp.sum(weight_v * weight_v, axis=-1, keepdims=True))    # (L, 1)
    w = weight_v * scale                                         # (L, E)

    # --- lane-dense padding: last dims to multiples of 128, batch to TB ---
    Ep = _round_up(E, 128)
    Lp = _round_up(L, 128)
    Kp = _round_up(K, 128)
    TB = min(block_b, _round_up(B, 8))
    Bp = _round_up(B, TB)

    xp = jnp.zeros((Bp, Ep), x.dtype).at[:B, :E].set(x)
    wp = jnp.zeros((Lp, Ep), w.dtype).at[:L, :E].set(w)
    pp = jnp.zeros((Kp, Lp), proto_concat.dtype).at[:K, :L].set(proto_concat)

    cost = pl.CostEstimate(
        flops=2 * Bp * Ep * Lp + 2 * Bp * Lp * Kp,
        transcendentals=Bp,
        bytes_accessed=4 * (Bp * Ep + Lp * Ep + Kp * Lp + Bp * Lp + Bp * Kp),
    )

    z_p, logits_p = pl.pallas_call(
        _deepcluster_kernel,
        out_shape=(
            jax.ShapeDtypeStruct((Bp, Lp), jnp.float32),
            jax.ShapeDtypeStruct((Bp, Kp), jnp.float32),
        ),
        grid_spec=pltpu.PrefetchScalarGridSpec(
            num_scalar_prefetch=0,
            grid=(Bp // TB,),
            in_specs=[
                pl.BlockSpec((TB, Ep), lambda i: (i, 0)),   # x tile
                pl.BlockSpec((Lp, Ep), lambda i: (0, 0)),   # W (resident)
                pl.BlockSpec((Kp, Lp), lambda i: (0, 0)),   # prototypes (resident)
            ],
            out_specs=[
                pl.BlockSpec((TB, Lp), lambda i: (i, 0)),   # z tile
                pl.BlockSpec((TB, Kp), lambda i: (i, 0)),   # logits tile
            ],
        ),
        compiler_params=pltpu.CompilerParams(
            dimension_semantics=("parallel",),
            vmem_limit_bytes=64 * 1024 * 1024,
        ),
        cost_estimate=cost,
    )(xp, wp, pp)

    # Strip padding, then split concatenated logits into per-head list.
    z = z_p[:B, :L]
    logits = logits_p[:B, :K]
    prototypes = []
    off = 0
    for k in proto_sizes:
        prototypes.append(logits[:, off:off + k])
        off += k
    return z, prototypes


def reference_forward(x, weight_v, weight_g, proto_list):
    """Pure-JAX reference matching the PyTorch module semantics."""
    v_norm = jnp.sqrt(jnp.sum(weight_v * weight_v, axis=-1, keepdims=True))
    w = weight_g * weight_v / v_norm
    z = x @ w.T
    z = z / jnp.maximum(jnp.linalg.norm(z, axis=-1, keepdims=True), 1e-12)
    return z, [z @ p.T for p in proto_list]


if __name__ == "__main__":
    # Small, module-consistent shapes.
    batch = 8
    embeddings_dim = 32
    latent_dim = 16
    num_prototypes = (10, 12)   # two prototype heads

    key = jax.random.PRNGKey(0)
    k_x, k_v, *k_protos = jax.random.split(key, 2 + len(num_prototypes))

    # Backbone is identity: x is already the (B, embeddings_dim) feature map.
    x = jax.random.normal(k_x, (batch, embeddings_dim), dtype=jnp.float32)

    # weight_norm(nn.Linear(E, L, bias=False)): v has shape (L, E), g = 1.
    weight_v = jax.random.normal(k_v, (latent_dim, embeddings_dim),
                                 dtype=jnp.float32) * 0.1
    weight_g = jnp.ones((latent_dim, 1), dtype=jnp.float32)

    proto_list = [
        jax.random.normal(kp, (k, latent_dim), dtype=jnp.float32) * 0.1
        for kp, k in zip(k_protos, num_prototypes)
    ]
    proto_concat = jnp.concatenate(proto_list, axis=0)

    z, prototypes = deepcluster_head_forward(
        x, weight_v, weight_g, proto_concat, num_prototypes)
    z = jax.block_until_ready(z)
    prototypes = [jax.block_until_ready(p) for p in prototypes]

    # Verify against the pure-JAX reference.
    z_ref, protos_ref = reference_forward(x, weight_v, weight_g, proto_list)
    assert z.shape == z_ref.shape
    assert jnp.allclose(z, z_ref, atol=1e-5, rtol=1e-5)
    for p, pr in zip(prototypes, protos_ref):
        assert p.shape == pr.shape
        assert jnp.allclose(p, pr, atol=1e-5, rtol=1e-5)
    # Unit-norm check on the projection output.
    assert jnp.allclose(jnp.linalg.norm(z, axis=-1), 1.0, atol=1e-5)

    print("KERNEL_OK")
</pallas_src>

<mosaic_0001>
module attributes {stable_mosaic.version = 11 : i64} {
  func.func @_deepcluster_kernel(%arg0: i32, %arg1: memref<8x128xf32, #tpu.memory_space<vmem>>, %arg2: memref<128x128xf32, #tpu.memory_space<vmem>>, %arg3: memref<128x128xf32, #tpu.memory_space<vmem>>, %arg4: memref<8x128xf32, #tpu.memory_space<vmem>>, %arg5: memref<8x128xf32, #tpu.memory_space<vmem>>) attributes {dimension_semantics = [#tpu.dimension_semantics<parallel>], iteration_bounds = array<i64: 1>, scalar_prefetch = 0 : i64, scratch_operands = 0 : i64, tpu.core_type = #tpu.core_type<tc>, window_params = [{transform_indices = @transform_0, window_bounds = array<i64: 8, 128>}, {pipeline_mode = #tpu.pipeline_mode<synchronous>, transform_indices = @transform_1, window_bounds = array<i64: 128, 128>}, {pipeline_mode = #tpu.pipeline_mode<synchronous>, transform_indices = @transform_2, window_bounds = array<i64: 128, 128>}, {transform_indices = @transform_3, window_bounds = array<i64: 8, 128>}, {transform_indices = @transform_4, window_bounds = array<i64: 8, 128>}]} {
    %c0 = arith.constant 0 : index
    %c0_0 = arith.constant 0 : index
    %0 = vector.load %arg1[%c0, %c0_0] : memref<8x128xf32, #tpu.memory_space<vmem>>, vector<8x128xf32>
    %c0_1 = arith.constant 0 : index
    %c0_2 = arith.constant 0 : index
    %1 = vector.load %arg2[%c0_1, %c0_2] : memref<128x128xf32, #tpu.memory_space<vmem>>, vector<128x128xf32>
    %cst = arith.constant dense<0.000000e+00> : vector<8x128xf32>
    %2 = tpu.matmul %0, %1, %cst {dimension_numbers = #tpu.dot_dimension_numbers<[1], [1], [0], [0], [0, 0, 1, 0], [], []>} : vector<8x128xf32>, vector<128x128xf32>, vector<8x128xf32> -> vector<8x128xf32>
    %3 = arith.mulf %2, %2 : vector<8x128xf32>
    %cst_3 = arith.constant dense<0.000000e+00> : vector<8xf32>
    %4 = vector.multi_reduction <add>, %3, %cst_3 [1] : vector<8x128xf32> to vector<8xf32>
    %5 = vector.shape_cast %4 : vector<8xf32> to vector<8x1xf32>
    %cst_4 = arith.constant 1.000000e-24 : f32
    %6 = vector.broadcast %cst_4 : f32 to vector<8x1xf32>
    %7 = arith.maximumf %5, %6 : vector<8x1xf32>
    %8 = math.rsqrt %7 : vector<8x1xf32>
    %9 = vector.broadcast %8 : vector<8x1xf32> to vector<8x128xf32>
    %10 = arith.mulf %2, %9 : vector<8x128xf32>
    %c0_5 = arith.constant 0 : index
    %c0_6 = arith.constant 0 : index
    %11 = vector.load %arg3[%c0_5, %c0_6] : memref<128x128xf32, #tpu.memory_space<vmem>>, vector<128x128xf32>
    %cst_7 = arith.constant dense<0.000000e+00> : vector<8x128xf32>
    %12 = tpu.matmul %10, %11, %cst_7 {dimension_numbers = #tpu.dot_dimension_numbers<[1], [1], [0], [0], [0, 0, 1, 0], [], []>} : vector<8x128xf32>, vector<128x128xf32>, vector<8x128xf32> -> vector<8x128xf32>
    %c0_8 = arith.constant 0 : index
    %c0_9 = arith.constant 0 : index
    %13 = vector.load %arg4[%c0_8, %c0_9] : memref<8x128xf32, #tpu.memory_space<vmem>>, vector<8x128xf32>
    tpu.vector_store %arg4[%c0_8, %c0_9], %10 {strides = array<i32>} : memref<8x128xf32, #tpu.memory_space<vmem>>, vector<8x128xf32>,
    %c0_10 = arith.constant 0 : index
    %c0_11 = arith.constant 0 : index
    %14 = vector.load %arg5[%c0_10, %c0_11] : memref<8x128xf32, #tpu.memory_space<vmem>>, vector<8x128xf32>
    tpu.vector_store %arg5[%c0_10, %c0_11], %12 {strides = array<i32>} : memref<8x128xf32, #tpu.memory_space<vmem>>, vector<8x128xf32>,
    return
  }
  func.func @transform_0(%arg0: i32) -> (i32, i32) {
    %c0_i32 = arith.constant 0 : i32
    %c0_i32_0 = arith.constant 0 : i32
    return %arg0, %c0_i32 : i32, i32
  }
  func.func @transform_1(%arg0: i32) -> (i32, i32) {
    %c0_i32 = arith.constant 0 : i32
    %c0_i32_0 = arith.constant 0 : i32
    %c0_i32_1 = arith.constant 0 : i32
    return %c0_i32, %c0_i32_0 : i32, i32
  }
  func.func @transform_2(%arg0: i32) -> (i32, i32) {
    %c0_i32 = arith.constant 0 : i32
    %c0_i32_0 = arith.constant 0 : i32
    %c0_i32_1 = arith.constant 0 : i32
    return %c0_i32, %c0_i32_0 : i32, i32
  }
  func.func @transform_3(%arg0: i32) -> (i32, i32) {
    %c0_i32 = arith.constant 0 : i32
    %c0_i32_0 = arith.constant 0 : i32
    return %arg0, %c0_i32 : i32, i32
  }
  func.func @transform_4(%arg0: i32) -> (i32, i32) {
    %c0_i32 = arith.constant 0 : i32
    %c0_i32_0 = arith.constant 0 : i32
    return %arg0, %c0_i32 : i32, i32
  }
}

</mosaic_0001>

<llo_original>
// kernel: deepcluster_head_forward.1
$region0: #{deepcluster_head_forward.1}
  #allocation0 [shape = 'u32[]', space=smem, size = 0x4, offset = 0x4, fixed_abs, tag = 'smem constant byte address 0x4 - core index']
  #allocation1 [shape = 'u32[144,128]{1,0:T(1,128)}', space=vmem, size = 0x12000, scoped, tag = 'internal scratch']
  %s0 = inlined_call_operand.vmem [shape: f32[8,128], index: 0, kind: input, shape index: {}]
  %s1 = inlined_call_operand.vmem [shape: f32[128,128], index: 1, kind: input, shape index: {}]
  %s2 = inlined_call_operand.vmem [shape: f32[128,128], index: 2, kind: input, shape index: {}]
  %s3 = inlined_call_operand.hbm [shape: f32[8,128], index: 3, kind: output, shape index: {0}]
  %s4 = inlined_call_operand.vmem [shape: f32[8,128], index: 4, kind: output, shape index: {1}]
  %5 = xla_tuple %s3, %s4
  %s6 = sld [smem:[#allocation0]]
  $region30: #{deepcluster_head_forward.1} parent=0
    _
  %s8 = ssub.s32 1, %s6
  %s9 = scalar_select 0, %s8, %s6
  $region1: #{deepcluster_head_forward.1} parent=0
    #allocation2 [shape = 'u8[4096]{0}', space=vmem, size = 0x1000, scoped, tag = 'output window, operand 0, single buffered']
    #allocation3 [shape = 's32[1]{0}', space=sflag, size = 0x4, scoped, tag = 'scoped memory for deepcluster_head_forward.1']
    %10 = vsyncpa [#allocation3], 0
    // Predicated region
    $region2: #{deepcluster_head_forward.1} parent=1 // pred_check
      _
    $region3: #{deepcluster_head_forward.1} parent=1 // pred_check_branch
      %12 = sbr.rel (0) target = $region5
    $region4: #{deepcluster_head_forward.1} parent=1 // pred_region
      _
    $region5: #{deepcluster_head_forward.1} parent=1 // pred_fallthru
      _
    // Predicated region
    $region6: #{deepcluster_head_forward.1} parent=1 // pred_check
      _
    $region7: #{deepcluster_head_forward.1} parent=1 // pred_check_branch
      %14 = sbr.rel (0) target = $region9
    $region8: #{deepcluster_head_forward.1} parent=1 // pred_region
      _
    $region9: #{deepcluster_head_forward.1} parent=1 // pred_fallthru
      _
    // Predicated region
    $region10: #{deepcluster_head_forward.1} parent=1 // pred_check
      _
    $region11: #{deepcluster_head_forward.1} parent=1 // pred_check_branch
      %16 = sbr.rel (0) target = $region13
    $region12: #{deepcluster_head_forward.1} parent=1 // pred_region
      _
    $region13: #{deepcluster_head_forward.1} parent=1 // pred_fallthru
      _
    %v17 = vld [vmem:[%s0] sm:$0xff]
    %v18 = vld [vmem:[%s1] sm:$0xff]
    %v19 = vld [vmem:[%s1 + $0x8] sm:$0xff]
    %v20 = vld [vmem:[%s1 + $0x10] sm:$0xff]
    %v21 = vld [vmem:[%s1 + $0x18] sm:$0xff]
    %v22 = vld [vmem:[%s1 + $0x20] sm:$0xff]
    %v23 = vld [vmem:[%s1 + $0x28] sm:$0xff]
    %v24 = vld [vmem:[%s1 + $0x30] sm:$0xff]
    %v25 = vld [vmem:[%s1 + $0x38] sm:$0xff]
    %v26 = vld [vmem:[%s1 + $0x40] sm:$0xff]
    %v27 = vld [vmem:[%s1 + $0x48] sm:$0xff]
    %v28 = vld [vmem:[%s1 + $0x50] sm:$0xff]
    %v29 = vld [vmem:[%s1 + $0x58] sm:$0xff]
    %v30 = vld [vmem:[%s1 + $0x60] sm:$0xff]
    %v31 = vld [vmem:[%s1 + $0x68] sm:$0xff]
    %v32 = vld [vmem:[%s1 + $0x70] sm:$0xff]
    %v33 = vld [vmem:[%s1 + $0x78] sm:$0xff]
    %34 = vmatprep.subr.mxu0 0.0
    %35 = vmatpush1.xpose.msra.mxu0 %v33
    %36 = vmatprep.subr.mxu0 0.0
    %37 = vmatpush1.xpose.msra.mxu0 %v32
    %38 = vmatprep.subr.mxu0 0.0
    %39 = vmatpush1.xpose.msra.mxu0 %v31
    %40 = vmatprep.subr.mxu0 0.0
    %41 = vmatpush1.xpose.msra.mxu0 %v30
    %42 = vmatprep.subr.mxu0 0.0
    %43 = vmatpush1.xpose.msra.mxu0 %v29
    %44 = vmatprep.subr.mxu0 0.0
    %45 = vmatpush1.xpose.msra.mxu0 %v28
    %46 = vmatprep.subr.mxu0 0.0
    %47 = vmatpush1.xpose.msra.mxu0 %v27
    %48 = vmatprep.subr.mxu0 0.0
    %49 = vmatpush1.xpose.msra.mxu0 %v26
    %50 = vmatprep.subr.mxu0 0.0
    %51 = vmatpush1.xpose.msra.mxu0 %v25
    %52 = vmatprep.subr.mxu0 0.0
    %53 = vmatpush1.xpose.msra.mxu0 %v24
    %54 = vmatprep.subr.mxu0 0.0
    %55 = vmatpush1.xpose.msra.mxu0 %v23
    %56 = vmatprep.subr.mxu0 0.0
    %57 = vmatpush1.xpose.msra.mxu0 %v22
    %58 = vmatprep.subr.mxu0 0.0
    %59 = vmatpush1.xpose.msra.mxu0 %v21
    %60 = vmatprep.subr.mxu0 0.0
    %61 = vmatpush1.xpose.msra.mxu0 %v20
    %62 = vmatprep.subr.mxu0 0.0
    %63 = vmatpush1.xpose.msra.mxu0 %v19
    %64 = vmatprep.subr.mxu0 0.0
    %65 = vmatpush1.xpose.msra.mxu0 %v18
    %66 = vmatprep.subr.mxu0 0.0
    %67 = vmatpush2.xpose.msra.mxu0 0.0
    %68 = vmatprep.subr.mxu0 0.0
    %69 = vmatpush2.xpose.msra.mxu0 0.0
    %70 = vmatprep.subr.mxu0 0.0
    %71 = vmatpush2.xpose.msra.mxu0 0.0
    %72 = vmatprep.subr.mxu0 0.0
    %73 = vmatpush2.xpose.msra.mxu0 0.0
    %74 = vmatprep.subr.mxu0 0.0
    %75 = vmatpush2.xpose.msra.mxu0 0.0
    %76 = vmatprep.subr.mxu0 0.0
    %77 = vmatpush2.xpose.msra.mxu0 0.0
    %78 = vmatprep.subr.mxu0 0.0
    %79 = vmatpush2.xpose.msra.mxu0 0.0
    %80 = vmatprep.subr.mxu0 0.0
    %81 = vmatpush2.xpose.msra.mxu0 0.0
    %82 = vmatprep.subr.mxu0 0.0
    %83 = vmatpush2.xpose.msra.mxu0 0.0
    %84 = vmatprep.subr.mxu0 0.0
    %85 = vmatpush2.xpose.msra.mxu0 0.0
    %86 = vmatprep.subr.mxu0 0.0
    %87 = vmatpush2.xpose.msra.mxu0 0.0
    %88 = vmatprep.subr.mxu0 0.0
    %89 = vmatpush2.xpose.msra.mxu0 0.0
    %90 = vmatprep.subr.mxu0 0.0
    %91 = vmatpush2.xpose.msra.mxu0 0.0
    %92 = vmatprep.subr.mxu0 0.0
    %93 = vmatpush2.xpose.msra.mxu0 0.0
    %94 = vmatprep.subr.mxu0 0.0
    %95 = vmatpush2.xpose.msra.mxu0 0.0
    %96 = vmatprep.subr.mxu0 0.0
    %97 = vmatpush2.xpose.msra.mxu0 0.0
    %98 = vmatprep.mubr.f32.mxu0 0.0
    %99 = vmatmul.mubr.f32.gmra.mxu0 %v17
    %v100 = vpop.f32.mrf.mxu0
    %v101 = vadd.f32 0.0, %v100
    %v102 = vpop.f32.mrf.mxu0
    %103 = vdwg.mxu0
    %v104 = vmul.f32 %v101, %v101
    %105 = vadd.xlane.f32.xlu0 %v104
    %v106 = vpop.xlane.xlu0 %105
    %v107 = vmax.f32 %v106, 1e-24
    %v108 = vrsqrt.pop %v107
    %v109 = vmul.f32 %v101, %v108
    %v110 = vld [vmem:[%s2] sm:$0xff]
    %v111 = vld [vmem:[%s2 + $0x8] sm:$0xff]
    %v112 = vld [vmem:[%s2 + $0x10] sm:$0xff]
    %v113 = vld [vmem:[%s2 + $0x18] sm:$0xff]
    %v114 = vld [vmem:[%s2 + $0x20] sm:$0xff]
    %v115 = vld [vmem:[%s2 + $0x28] sm:$0xff]
    %v116 = vld [vmem:[%s2 + $0x30] sm:$0xff]
    %v117 = vld [vmem:[%s2 + $0x38] sm:$0xff]
    %v118 = vld [vmem:[%s2 + $0x40] sm:$0xff]
    %v119 = vld [vmem:[%s2 + $0x48] sm:$0xff]
    %v120 = vld [vmem:[%s2 + $0x50] sm:$0xff]
    %v121 = vld [vmem:[%s2 + $0x58] sm:$0xff]
    %v122 = vld [vmem:[%s2 + $0x60] sm:$0xff]
    %v123 = vld [vmem:[%s2 + $0x68] sm:$0xff]
    %v124 = vld [vmem:[%s2 + $0x70] sm:$0xff]
    %v125 = vld [vmem:[%s2 + $0x78] sm:$0xff]
    %126 = vmatprep.subr.mxu0 0.0
    %127 = vmatpush1.xpose.msra.mxu0 %v125
    %128 = vmatprep.subr.mxu0 0.0
    %129 = vmatpush1.xpose.msra.mxu0 %v124
    %130 = vmatprep.subr.mxu0 0.0
    %131 = vmatpush1.xpose.msra.mxu0 %v123
    %132 = vmatprep.subr.mxu0 0.0
    %133 = vmatpush1.xpose.msra.mxu0 %v122
    %134 = vmatprep.subr.mxu0 0.0
    %135 = vmatpush1.xpose.msra.mxu0 %v121
    %136 = vmatprep.subr.mxu0 0.0
    %137 = vmatpush1.xpose.msra.mxu0 %v120
    %138 = vmatprep.subr.mxu0 0.0
    %139 = vmatpush1.xpose.msra.mxu0 %v119
    %140 = vmatprep.subr.mxu0 0.0
    %141 = vmatpush1.xpose.msra.mxu0 %v118
    %142 = vmatprep.subr.mxu0 0.0
    %143 = vmatpush1.xpose.msra.mxu0 %v117
    %144 = vmatprep.subr.mxu0 0.0
    %145 = vmatpush1.xpose.msra.mxu0 %v116
    %146 = vmatprep.subr.mxu0 0.0
    %147 = vmatpush1.xpose.msra.mxu0 %v115
    %148 = vmatprep.subr.mxu0 0.0
    %149 = vmatpush1.xpose.msra.mxu0 %v114
    %150 = vmatprep.subr.mxu0 0.0
    %151 = vmatpush1.xpose.msra.mxu0 %v113
    %152 = vmatprep.subr.mxu0 0.0
    %153 = vmatpush1.xpose.msra.mxu0 %v112
    %154 = vmatprep.subr.mxu0 0.0
    %155 = vmatpush1.xpose.msra.mxu0 %v111
    %156 = vmatprep.subr.mxu0 0.0
    %157 = vmatpush1.xpose.msra.mxu0 %v110
    %158 = vmatprep.subr.mxu0 0.0
    %159 = vmatpush2.xpose.msra.mxu0 0.0
    %160 = vmatprep.subr.mxu0 0.0
    %161 = vmatpush2.xpose.msra.mxu0 0.0
    %162 = vmatprep.subr.mxu0 0.0
    %163 = vmatpush2.xpose.msra.mxu0 0.0
    %164 = vmatprep.subr.mxu0 0.0
    %165 = vmatpush2.xpose.msra.mxu0 0.0
    %166 = vmatprep.subr.mxu0 0.0
    %167 = vmatpush2.xpose.msra.mxu0 0.0
    %168 = vmatprep.subr.mxu0 0.0
    %169 = vmatpush2.xpose.msra.mxu0 0.0
    %170 = vmatprep.subr.mxu0 0.0
    %171 = vmatpush2.xpose.msra.mxu0 0.0
    %172 = vmatprep.subr.mxu0 0.0
    %173 = vmatpush2.xpose.msra.mxu0 0.0
    %174 = vmatprep.subr.mxu0 0.0
    %175 = vmatpush2.xpose.msra.mxu0 0.0
    %176 = vmatprep.subr.mxu0 0.0
    %177 = vmatpush2.xpose.msra.mxu0 0.0
    %178 = vmatprep.subr.mxu0 0.0
    %179 = vmatpush2.xpose.msra.mxu0 0.0
    %180 = vmatprep.subr.mxu0 0.0
    %181 = vmatpush2.xpose.msra.mxu0 0.0
    %182 = vmatprep.subr.mxu0 0.0
    %183 = vmatpush2.xpose.msra.mxu0 0.0
    %184 = vmatprep.subr.mxu0 0.0
    %185 = vmatpush2.xpose.msra.mxu0 0.0
    %186 = vmatprep.subr.mxu0 0.0
    %187 = vmatpush2.xpose.msra.mxu0 0.0
    %188 = vmatprep.subr.mxu0 0.0
    %189 = vmatpush2.xpose.msra.mxu0 0.0
    %190 = vmatprep.mubr.f32.mxu0 0.0
    %191 = vmatmul.mubr.f32.gmra.mxu0 %v109
    %v192 = vpop.f32.mrf.mxu0
    %v193 = vadd.f32 0.0, %v192
    %v194 = vpop.f32.mrf.mxu0
    %195 = vdwg.mxu0
    %196 = vst [vmem:[#allocation2] sm:$0xff] %v109
    %197 = vst [vmem:[%s4] sm:$0xff] %v193
    // Predicated region
    $region14: #{deepcluster_head_forward.1} parent=1 // pred_check
      _
    $region15: #{deepcluster_head_forward.1} parent=1 // pred_check_branch
      %199 = sbr.rel (0) target = $region17
    $region16: #{deepcluster_head_forward.1} parent=1 // pred_region
      %s201 = ssub.s32 128, 128
      %202 = vsyncadd [#allocation3], %s201
      %s204 = sshll.u32 [#allocation2], 4
      %s205 = int_to_ptr.vmem [resolvable:$true] %s204
      %207 = dma.vmem_to_hbm [thread:$0]  %s205, 128, %s3, [#allocation3]
    $region17: #{deepcluster_head_forward.1} parent=1 // pred_fallthru
      _
    // Predicated region
    $region18: #{deepcluster_head_forward.1} parent=1 // pred_check
      _
    $region19: #{deepcluster_head_forward.1} parent=1 // pred_check_branch
      %209 = sbr.rel (0) target = $region21
    $region20: #{deepcluster_head_forward.1} parent=1 // pred_region
      _
    $region21: #{deepcluster_head_forward.1} parent=1 // pred_fallthru
      _
    // Predicated region
    $region22: #{deepcluster_head_forward.1} parent=1 // pred_check
      _
    $region23: #{deepcluster_head_forward.1} parent=1 // pred_check_branch
      %211 = sbr.rel (0) target = $region25
    $region24: #{deepcluster_head_forward.1} parent=1 // pred_region
      %212 = dma.done [#allocation3], 128
    $region25: #{deepcluster_head_forward.1} parent=1 // pred_fallthru
      _
    // Predicated region
    $region26: #{deepcluster_head_forward.1} parent=1 // pred_check
      _
    $region27: #{deepcluster_head_forward.1} parent=1 // pred_check_branch
      %214 = sbr.rel (0) target = $region29
    $region28: #{deepcluster_head_forward.1} parent=1 // pred_region
      _
    $region29: #{deepcluster_head_forward.1} parent=1 // pred_fallthru
      _
    %215 = vsyncpa [#allocation3], 1

</llo_original>
